<compile_context>
chip_gen: v5e
topology: v5e:2x2
jax: 0.10.0
libtpu: 0.0.40
codegen_flags: <defaults>
</compile_context>

<pallas_src>
import functools

import numpy as np
import jax
import jax.numpy as jnp
from jax.experimental import pallas as pl
from jax.experimental.pallas import tpu as pltpu

EPS = 1e-5


# ---------------------------------------------------------------------------
# in-kernel helpers
# ---------------------------------------------------------------------------
def _conv3x3_accum(y, w_ref, col, h, w):
    """3x3 'same' convolution of a flattened image via 9 accumulated matmuls.

    y:     (P, C) f32, P = H*W row-major (h-major, w-minor).
    w_ref: (9, Cin, Cout) VMEM ref, tap order k = (ky)*3 + (kx), ky/kx in 0..2.
    col:   (P, 1) int32, precomputed w-index of every flattened row.

    Each tap z[h, w] = y[h+dy, w+dx] (zeros outside) is a sublane rotation of
    the flattened image by dy*W + dx (XLU slot, no VMEM patch) plus a boundary
    mask; it feeds the MXU directly:  acc += tap @ W[ky, kx].
    All wrapped-around rows of the rotation are provably covered by the mask.
    """
    p, _ = y.shape
    row = jax.lax.broadcasted_iota(jnp.int32, (p, 1), 0)
    h_ok = {1: row < (h - 1) * w, -1: row >= w}     # source h in bounds
    w_ok = {1: col < (w - 1), -1: col >= 1}         # source w in bounds
    acc = None
    for dy in (-1, 0, 1):
        for dx in (-1, 0, 1):
            s = dy * w + dx                          # flattened shift
            tap = y if s == 0 else pltpu.roll(y, (-s) % p, axis=0)
            mask = None
            if dy != 0:
                mask = h_ok[dy]
            if dx != 0:
                mask = w_ok[dx] if mask is None else jnp.logical_and(mask, w_ok[dx])
            if mask is not None:
                tap = jnp.where(mask, tap, jnp.zeros_like(tap))
            k = (dy + 1) * 3 + (dx + 1)
            term = jnp.dot(tap.astype(w_ref.dtype), w_ref[k],
                           preferred_element_type=jnp.float32)
            acc = term if acc is None else acc + term
    return acc


# ---------------------------------------------------------------------------
# kernels
# ---------------------------------------------------------------------------
def _bn1_stats_kernel(x_ref, stats_ref):
    # x_ref: (P, C) matmul dtype; stats_ref: (2, C) f32 per-image (sum, sumsq).
    x = x_ref[...].astype(jnp.float32)
    s = jnp.sum(x, axis=0, keepdims=True)
    ss = jnp.sum(x * x, axis=0, keepdims=True)
    stats_ref[...] = jnp.concatenate([s, ss], axis=0)


def _bn1_relu_conv1_kernel(x_ref, scale1_ref, shift1_ref, w1_ref, col_ref,
                           c1_ref, stats2_ref, *, h, w):
    # x_ref: (P, C); w1_ref: (9, C, C); c1_ref: (P, C); stats2_ref: (2, C).
    x = x_ref[...].astype(jnp.float32)
    # folded training-mode BN1 (batch-stats scale/shift precomputed) + ReLU, f32
    y = jnp.maximum(x * scale1_ref[...] + shift1_ref[...], 0.0)
    conv = _conv3x3_accum(y, w1_ref, col_ref[...], h, w)            # (P, C) f32
    # conv1 bias intentionally omitted: a per-channel constant is exactly
    # cancelled by BN2's training-mode batch-mean subtraction (this would be
    # wrong for eval-mode running statistics).
    c1 = conv.astype(c1_ref.dtype)
    c1_ref[...] = c1
    # BN2 partial stats from the SAME (possibly bf16-rounded) values pass C
    # reads, so the wrapper-side fold is self-consistent with what it scales.
    c1f = c1.astype(jnp.float32)
    s = jnp.sum(c1f, axis=0, keepdims=True)
    ss = jnp.sum(c1f * c1f, axis=0, keepdims=True)
    stats2_ref[...] = jnp.concatenate([s, ss], axis=0)


def _bn2_relu_conv2_res_kernel(c1_ref, xres_ref, scale2_ref, shift2_ref,
                               w2_ref, b2_ref, col_ref, out_ref, *, h, w):
    # c1_ref: (P, C) matmul dtype; xres_ref/out_ref: (P, C) f32.
    c1 = c1_ref[...].astype(jnp.float32)
    z = jnp.maximum(c1 * scale2_ref[...] + shift2_ref[...], 0.0)
    conv = _conv3x3_accum(z, w2_ref, col_ref[...], h, w) + b2_ref[...]
    out_ref[...] = (conv + xres_ref[...]).astype(out_ref.dtype)


# ---------------------------------------------------------------------------
# wrapper
# ---------------------------------------------------------------------------
def _compiler_params(semantics, io_bytes_per_step, temp_bytes_per_step):
    """Generation-aware VMEM limit: double-buffered I/O blocks + in-kernel
    value temporaries + headroom, clamped to ~75% of physical VMEM
    (~48 MiB on v7x's 64 MiB parts, ~96 MiB on v5e/v6e's 128 MiB parts)."""
    try:
        cap = int(pltpu.get_tpu_info().vmem_capacity_bytes)
    except Exception:
        cap = 64 << 20  # conservative (v7x) if the query is unavailable
    need = 2 * io_bytes_per_step + temp_bytes_per_step + (4 << 20)
    limit = int(min(max(need, 32 << 20), (cap * 3) // 4))
    return pltpu.CompilerParams(dimension_semantics=semantics,
                                vmem_limit_bytes=limit)


def _fold_bn(partial_stats, gamma, beta, count):
    """(N, 2, C) per-image partial sums -> per-channel (scale, shift), each (1, C)."""
    total = jnp.sum(partial_stats, axis=0)          # (2, C): [sum, sumsq]
    mean = total[0] / count
    # biased variance (training BN); clamp against f32 cancellation going <0.
    var = jnp.maximum(total[1] / count - mean * mean, 0.0)
    inv = jax.lax.rsqrt(var + EPS)
    scale = gamma * inv
    shift = beta - mean * scale
    c = gamma.shape[0]
    return (scale.reshape(1, c).astype(jnp.float32),
            shift.reshape(1, c).astype(jnp.float32))


def rsub_block(x_nchw, params, *, matmul_dtype=jnp.bfloat16):
    """Pallas implementation of RSubBlock.forward; input/output are NCHW f32."""
    n, c_in, h, w = x_nchw.shape
    w1, w2 = params["conv1_w"], params["conv2_w"]
    c = w1.shape[0]
    assert c_in == c, "residual connection requires in_channels == out_channels"
    p = h * w
    count = n * p
    ab = jnp.dtype(matmul_dtype).itemsize          # bytes of the narrow dtype
    img_ab = p * c * ab
    img_f32 = p * c * 4
    # in-kernel value temporaries of the conv: y/z, rolled tap, masked tap,
    # cast tap, f32 accumulator (+ slack) -- all (P, C).
    conv_temp = 6 * p * c * 4

    # pre-flatten spatial dims in the wrapper (free XLA layout work); kernels
    # never reshape their tiles.
    x_res = jnp.transpose(x_nchw, (0, 2, 3, 1)).reshape(n, p, c)      # f32
    x_ab = x_res.astype(matmul_dtype)                                 # A/B feed
    # (Cout, Cin, 3, 3) -> (ky, kx, Cin, Cout) -> (9, Cin, Cout): matches taps.
    w1r = jnp.transpose(w1, (2, 3, 1, 0)).reshape(9, c, c).astype(matmul_dtype)
    w2r = jnp.transpose(w2, (2, 3, 1, 0)).reshape(9, c, c).astype(matmul_dtype)
    b2 = params["conv2_b"].reshape(1, c).astype(jnp.float32)
    # precomputed w-index of every flattened row (avoids in-kernel vector mod).
    col_idx = jnp.tile(jnp.arange(w, dtype=jnp.int32), h).reshape(p, 1)

    img_spec = pl.BlockSpec((None, p, c), lambda i: (i, 0, 0))
    stat_spec = pl.BlockSpec((None, 2, c), lambda i: (i, 0, 0))
    chan_spec = pl.BlockSpec((1, c), lambda i: (0, 0))
    wgt_spec = pl.BlockSpec((9, c, c), lambda i: (0, 0, 0))
    col_spec = pl.BlockSpec((p, 1), lambda i: (0, 0))

    # ---- pass A: BN1 batch statistics (per-image partial sums) -------------
    stats1 = pl.pallas_call(
        _bn1_stats_kernel,
        out_shape=jax.ShapeDtypeStruct((n, 2, c), jnp.float32),
        grid=(n,),
        in_specs=[img_spec],
        out_specs=stat_spec,
        compiler_params=_compiler_params(("parallel",), img_ab, 2 * p * c * 4),
        cost_estimate=pl.CostEstimate(flops=3 * count * c, transcendentals=0,
                                      bytes_accessed=count * c * ab + n * 2 * c * 4),
    )(x_ab)
    scale1, shift1 = _fold_bn(stats1, params["bn1_gamma"], params["bn1_beta"], count)

    # ---- pass B: BN1+ReLU -> conv1 (9 accumulated tap matmuls) + BN2 stats --
    conv_flops = 2 * count * 9 * c * c
    conv1_out, stats2 = pl.pallas_call(
        functools.partial(_bn1_relu_conv1_kernel, h=h, w=w),
        out_shape=(jax.ShapeDtypeStruct((n, p, c), matmul_dtype),
                   jax.ShapeDtypeStruct((n, 2, c), jnp.float32)),
        grid=(n,),
        in_specs=[img_spec, chan_spec, chan_spec, wgt_spec, col_spec],
        out_specs=(img_spec, stat_spec),
        compiler_params=_compiler_params(("parallel",), 2 * img_ab, conv_temp),
        cost_estimate=pl.CostEstimate(
            flops=conv_flops + 12 * count * c, transcendentals=0,
            bytes_accessed=2 * count * c * ab + n * 2 * c * 4 + 9 * c * c * ab),
    )(x_ab, scale1, shift1, w1r, col_idx)
    scale2, shift2 = _fold_bn(stats2, params["bn2_gamma"], params["bn2_beta"], count)

    # ---- pass C: BN2+ReLU -> conv2 + bias -> + residual ---------------------
    out_flat = pl.pallas_call(
        functools.partial(_bn2_relu_conv2_res_kernel, h=h, w=w),
        out_shape=jax.ShapeDtypeStruct((n, p, c), jnp.float32),
        grid=(n,),
        in_specs=[img_spec, img_spec, chan_spec, chan_spec, wgt_spec, chan_spec,
                  col_spec],
        out_specs=img_spec,
        compiler_params=_compiler_params(("parallel",), img_ab + 2 * img_f32,
                                         conv_temp),
        cost_estimate=pl.CostEstimate(
            flops=conv_flops + 14 * count * c, transcendentals=0,
            bytes_accessed=count * c * (ab + 8) + 9 * c * c * ab),
    )(conv1_out, x_res, scale2, shift2, w2r, b2, col_idx)

    return jnp.transpose(out_flat.reshape(n, h, w, c), (0, 3, 1, 2))


# ---------------------------------------------------------------------------
# params / reference
# ---------------------------------------------------------------------------
def init_params(key, c_in, c_out):
    """Deterministic synthetic init mirroring RSubBlock.__init__ shapes."""
    k1, k2 = jax.random.split(key)
    fan1 = c_in * 9
    fan2 = c_out * 9
    return {
        "bn1_gamma": jnp.ones((c_in,), jnp.float32),
        "bn1_beta": jnp.zeros((c_in,), jnp.float32),
        "conv1_w": jax.random.normal(k1, (c_out, c_in, 3, 3), jnp.float32)
                   * np.sqrt(2.0 / fan1),
        "conv1_b": jnp.zeros((c_out,), jnp.float32),   # nn.init.zeros_
        "bn2_gamma": jnp.ones((c_out,), jnp.float32),
        "bn2_beta": jnp.zeros((c_out,), jnp.float32),
        "conv2_w": jax.random.normal(k2, (c_out, c_out, 3, 3), jnp.float32)
                   * np.sqrt(2.0 / fan2),
        "conv2_b": jnp.zeros((c_out,), jnp.float32),   # nn.init.zeros_
    }


def rsub_block_ref(x, params):
    """Pure-JAX (XLA) reference matching the PyTorch forward (training-mode BN)."""
    def bn(v, g, b):
        m = jnp.mean(v, axis=(0, 2, 3), keepdims=True)
        var = jnp.mean((v - m) ** 2, axis=(0, 2, 3), keepdims=True)
        return (v - m) * jax.lax.rsqrt(var + EPS) * g.reshape(1, -1, 1, 1) \
               + b.reshape(1, -1, 1, 1)

    def conv(v, wt, b):
        y = jax.lax.conv_general_dilated(
            v, wt, window_strides=(1, 1), padding=((1, 1), (1, 1)),
            dimension_numbers=("NCHW", "OIHW", "NCHW"))
        return y + b.reshape(1, -1, 1, 1)

    rx = x
    hh = jnp.maximum(bn(x, params["bn1_gamma"], params["bn1_beta"]), 0.0)
    hh = conv(hh, params["conv1_w"], params["conv1_b"])
    hh = jnp.maximum(bn(hh, params["bn2_gamma"], params["bn2_beta"]), 0.0)
    hh = conv(hh, params["conv2_w"], params["conv2_b"])
    return hh + rx


if __name__ == "__main__":
    key = jax.random.PRNGKey(0)
    kx_, kp_ = jax.random.split(key)
    N, C, H, W = 2, 4, 16, 16                 # small NCHW input, in_ch == out_ch
    x = jax.random.normal(kx_, (N, C, H, W), jnp.float32)
    params = init_params(kp_, C, C)

    ref = rsub_block_ref(x, params)

    # structural check: all-f32 path (inputs, taps, MXU, intermediate), tight tol
    out_f32 = jax.block_until_ready(rsub_block(x, params, matmul_dtype=jnp.float32))
    np.testing.assert_allclose(np.asarray(out_f32), np.asarray(ref),
                               rtol=2e-3, atol=2e-3)

    # default perf path: bf16 inputs for passes A/B, bf16 MXU operands (f32
    # accumulation) and a bf16 conv1 intermediate; tolerance covers the extra
    # bf16 rounding through the two 3x3 convolutions.
    out = jax.block_until_ready(rsub_block(x, params))
    np.testing.assert_allclose(np.asarray(out), np.asarray(ref),
                               rtol=3e-2, atol=5e-2)

    print("KERNEL_OK")
</pallas_src>

<mosaic_0001>
module attributes {stable_mosaic.version = 11 : i64} {
  func.func @_bn1_stats_kernel(%arg0: i32, %arg1: memref<1x256x4xf32, #tpu.memory_space<vmem>>, %arg2: memref<1x2x4xf32, #tpu.memory_space<vmem>>) attributes {dimension_semantics = [#tpu.dimension_semantics<parallel>], iteration_bounds = array<i64: 2>, scalar_prefetch = 0 : i64, scratch_operands = 0 : i64, tpu.core_type = #tpu.core_type<tc>, window_params = [{transform_indices = @transform_0, window_bounds = array<i64: 1, 256, 4>}, {transform_indices = @transform_1, window_bounds = array<i64: 1, 2, 4>}]} {
    %c0 = arith.constant 0 : index
    %c0_0 = arith.constant 0 : index
    %c0_1 = arith.constant 0 : index
    %0 = vector.load %arg1[%c0, %c0_0, %c0_1] : memref<1x256x4xf32, #tpu.memory_space<vmem>>, vector<1x256x4xf32>
    %1 = vector.shape_cast %0 : vector<1x256x4xf32> to vector<256x4xf32>
    %cst = arith.constant dense<0.000000e+00> : vector<4xf32>
    %2 = vector.multi_reduction <add>, %1, %cst [0] : vector<256x4xf32> to vector<4xf32>
    %3 = vector.shape_cast %2 : vector<4xf32> to vector<1x4xf32>
    %4 = arith.mulf %1, %1 : vector<256x4xf32>
    %cst_2 = arith.constant dense<0.000000e+00> : vector<4xf32>
    %5 = vector.multi_reduction <add>, %4, %cst_2 [0] : vector<256x4xf32> to vector<4xf32>
    %6 = vector.shape_cast %5 : vector<4xf32> to vector<1x4xf32>
    %7 = tpu.concatenate %3, %6 in 0 : vector<1x4xf32>, vector<1x4xf32> -> vector<2x4xf32>
    %c0_3 = arith.constant 0 : index
    %c0_4 = arith.constant 0 : index
    %c0_5 = arith.constant 0 : index
    %8 = vector.load %arg2[%c0_3, %c0_4, %c0_5] : memref<1x2x4xf32, #tpu.memory_space<vmem>>, vector<1x2x4xf32>
    %9 = vector.shape_cast %8 : vector<1x2x4xf32> to vector<2x4xf32>
    %10 = vector.shape_cast %7 : vector<2x4xf32> to vector<1x2x4xf32>
    tpu.vector_store %arg2[%c0_3, %c0_4, %c0_5], %10 {strides = array<i32>} : memref<1x2x4xf32, #tpu.memory_space<vmem>>, vector<1x2x4xf32>,
    return
  }
  func.func @transform_0(%arg0: i32) -> (i32, i32, i32) {
    %c0_i32 = arith.constant 0 : i32
    %c0_i32_0 = arith.constant 0 : i32
    %c0_i32_1 = arith.constant 0 : i32
    return %arg0, %c0_i32, %c0_i32_0 : i32, i32, i32
  }
  func.func @transform_1(%arg0: i32) -> (i32, i32, i32) {
    %c0_i32 = arith.constant 0 : i32
    %c0_i32_0 = arith.constant 0 : i32
    %c0_i32_1 = arith.constant 0 : i32
    return %arg0, %c0_i32, %c0_i32_0 : i32, i32, i32
  }
}

</mosaic_0001>

<llo_original>
// kernel: tpu_custom_call.1
$region0: #{tpu_custom_call.1}
  #allocation0 [shape = 'u32[]', space=smem, size = 0x4, offset = 0x4, fixed_abs, tag = 'smem constant byte address 0x4 - core index']
  #allocation1 [shape = 'u32[72,128]{1,0:T(1,128)}', space=vmem, size = 0x9000, scoped, tag = 'internal scratch']
  %s0 = inlined_call_operand.vmem [shape: f32[2,256,4], index: 0, kind: input, shape index: {}]
  %s1 = inlined_call_operand.hbm [shape: f32[2,2,4], index: 1, kind: output, shape index: {}]
  %s2 = sld [smem:[#allocation0]]
  $region37: #{tpu_custom_call.1} parent=0
    _
  %s4 = ssub.s32 1, %s2
  %s5 = scalar_select 0, %s4, %s2
  $region1: #{tpu_custom_call.1} parent=0
    #allocation2 [shape = 'u8[2048]{0}', space=vmem, size = 0x800, scoped, tag = 'output window, operand 0']
    #allocation3 [shape = 's32[2]{0}', space=sflag, size = 0x8, scoped, tag = 'scoped memory for tpu_custom_call.1']
    %6 = vsyncpa [#allocation3], 0
    %s7 = scalar_lea.sflag [#allocation3], 1
    %8 = vsyncpa %s7, 0
    loop: start=0, step=1, limit=4
    $region2: #{tpu_custom_call.1} parent=1 // loop_pre_header
      _
    $region3: #{tpu_custom_call.1} parent=1 // loop_header
      %s10 = sphi 0, %s14
      %p11 = scmp.ge.s32.totalorder %s10, 4
      %s20 = sphi 0, %s22
      %s23 = sphi 0, %s20
      %s24 = sphi 0, %s23
      %s40 = sphi 0, %s24
      %s46 = sphi 0, %s48
      %s49 = sphi 0, %s46
      %s50 = sphi 0, %s49
      %s66 = sphi 0, %s50
    $region4: #{tpu_custom_call.1} parent=1 // loop_header_branch
      %13 = sbr.rel (%p11) target = $region8
    $region5: #{tpu_custom_call.1} parent=1 // loop_body
      %s15 = ssub.s32 %s10, 1
      %s16 = ssub.s32 %s10, 2
      %s17 = sadd.s32 %s10, 1
      %s18 = ssub.s32 %s10, %s17
      %p19 = scmp.eq.s32.totalorder %s18, 0
      %s21 = sadd.s32 %s20, 1
      %s22 = scalar_select %p19, %s20, %s21
      %p25 = pneg %p19
      %p26 = scmp.eq.s32.totalorder %s10, 1
      %p27 = por %p25, %p26
      %p28 = scmp.ne.s32.totalorder %s20, %s23
      %p29 = scmp.eq.s32.totalorder %s10, 0
      %p30 = por %p28, %p29
      %p31 = scmp.ne.s32.totalorder %s20, %s23
      %p32 = scmp.eq.s32.totalorder %s15, 1
      %p33 = por %p31, %p32
      %p34 = scmp.ne.s32.totalorder %s23, %s24
      %p35 = scmp.eq.s32.totalorder %s15, 0
      %p36 = por %p34, %p35
      %p37 = scmp.ne.s32.totalorder %s23, %s24
      %p38 = scmp.eq.s32.totalorder %s16, 1
      %p39 = por %p37, %p38
      %p41 = scmp.ne.s32.totalorder %s24, %s40
      %p42 = scmp.eq.s32.totalorder %s16, 0
      %p43 = por %p41, %p42
      %s44 = ssub.s32 %s10, %s17
      %p45 = scmp.eq.s32.totalorder %s44, 0
      %s47 = sadd.s32 %s46, 1
      %s48 = scalar_select %p45, %s46, %s47
      %p51 = pneg %p45
      %p52 = scmp.eq.s32.totalorder %s10, 1
      %p53 = por %p51, %p52
      %p54 = scmp.ne.s32.totalorder %s46, %s49
      %p55 = scmp.eq.s32.totalorder %s10, 0
      %p56 = por %p54, %p55
      %p57 = scmp.ne.s32.totalorder %s46, %s49
      %p58 = scmp.eq.s32.totalorder %s15, 1
      %p59 = por %p57, %p58
      %p60 = scmp.ne.s32.totalorder %s49, %s50
      %p61 = scmp.eq.s32.totalorder %s15, 0
      %p62 = por %p60, %p61
      %p63 = scmp.ne.s32.totalorder %s49, %s50
      %p64 = scmp.eq.s32.totalorder %s16, 1
      %p65 = por %p63, %p64
      %p67 = scmp.ne.s32.totalorder %s50, %s66
      %p68 = scmp.eq.s32.totalorder %s16, 0
      %p69 = por %p67, %p68
      %p70 = scmp.le.s32.totalorder 1, %s10
      %p71 = scmp.lt.s32.totalorder %s10, 3
      %p72 = pnand %p70, %p71
      %p73 = pneg %p72
      // Predicated region
      $region9: #{tpu_custom_call.1} parent=5 // pred_check
        _
      $region10: #{tpu_custom_call.1} parent=5 // pred_check_branch
        %75 = sbr.rel (%p72) target = $region12
      $region11: #{tpu_custom_call.1} parent=5 // pred_region
        %s76 = ssub.s32 %s10, 1
      $region12: #{tpu_custom_call.1} parent=5 // pred_fallthru
        _
      %p77 = scmp.lt.s32.totalorder %s10, 2
      // Predicated region
      $region13: #{tpu_custom_call.1} parent=5 // pred_check
        %p78 = pneg %p77
      $region14: #{tpu_custom_call.1} parent=5 // pred_check_branch
        %80 = sbr.rel (%p78) target = $region16
      $region15: #{tpu_custom_call.1} parent=5 // pred_region
        // Predicated region
        $region17: #{tpu_custom_call.1} parent=15 // pred_check
          %p81 = pneg %p30
        $region18: #{tpu_custom_call.1} parent=15 // pred_check_branch
          %83 = sbr.rel (%p81) target = $region20
        $region19: #{tpu_custom_call.1} parent=15 // pred_region
          %p84 = scmp.lt.s32.totalorder %s10, 1
          %s85 = scalar_select %p84, %s10, 1
          %s86 = smul.addr %s85, 32
          %s87 = smul.addr %s86, 8
          %s88 = scalar_lea.vmem %s0, %s87
        $region20: #{tpu_custom_call.1} parent=15 // pred_fallthru
          _
      $region16: #{tpu_custom_call.1} parent=5 // pred_fallthru
        _
      %p89 = scmp.le.s32.totalorder 1, %s10
      %p90 = scmp.lt.s32.totalorder %s10, 3
      %p91 = pnand %p89, %p90
      %p92 = pneg %p91
      // Predicated region
      $region21: #{tpu_custom_call.1} parent=5 // pred_check
        _
      $region22: #{tpu_custom_call.1} parent=5 // pred_check_branch
        %94 = sbr.rel (%p91) target = $region24
      $region23: #{tpu_custom_call.1} parent=5 // pred_region
        %s95 = ssub.s32 %s10, 1
        %p96 = scmp.lt.s32.totalorder %s15, 1
        %s97 = scalar_select %p96, %s15, 1
        %s98 = smul.addr %s97, 32
        %s99 = smul.addr %s98, 8
        %s100 = scalar_lea.vmem %s0, %s99
        %p101 = pneg %p36
        %p102 = pneg %p33
        %p103 = pneg %p62
        %p104 = pneg %p59
        %s105 = sand.u32 %s49, 1
        %s106 = scalar_lea.sflag [#allocation3], %s105
        %s107 = sand.u32 %s49, 1
        %s108 = smul.addr %s107, 2
        %s109 = scalar_lea.vmem [#allocation2], %s108
        %p110 = scmp.lt.s32.totalorder %s15, 1
        %s111 = scalar_select %p110, %s15, 1
        %s112 = smul.addr %s111, 32
        %s113 = smul.addr %s112, 8
        %s114 = scalar_lea.vmem %s0, %s113
        %v115 = vld [vmem:[%s114] sm:$0xff]
        %v116 = vld [vmem:[%s114 + $0x8] sm:$0xff]
        %v117 = vld [vmem:[%s114 + $0x10] sm:$0xff]
        %v118 = vld [vmem:[%s114 + $0x18] sm:$0xff]
        %v119 = vld [vmem:[%s114 + $0x20] sm:$0xff]
        %v120 = vld [vmem:[%s114 + $0x28] sm:$0xff]
        %v121 = vld [vmem:[%s114 + $0x30] sm:$0xff]
        %v122 = vld [vmem:[%s114 + $0x38] sm:$0xff]
        %v123 = vld [vmem:[%s114 + $0x40] sm:$0xff]
        %v124 = vld [vmem:[%s114 + $0x48] sm:$0xff]
        %v125 = vld [vmem:[%s114 + $0x50] sm:$0xff]
        %v126 = vld [vmem:[%s114 + $0x58] sm:$0xff]
        %v127 = vld [vmem:[%s114 + $0x60] sm:$0xff]
        %v128 = vld [vmem:[%s114 + $0x68] sm:$0xff]
        %v129 = vld [vmem:[%s114 + $0x70] sm:$0xff]
        %v130 = vld [vmem:[%s114 + $0x78] sm:$0xff]
        %v131 = vld [vmem:[%s114 + $0x80] sm:$0xff]
        %v132 = vld [vmem:[%s114 + $0x88] sm:$0xff]
        %v133 = vld [vmem:[%s114 + $0x90] sm:$0xff]
        %v134 = vld [vmem:[%s114 + $0x98] sm:$0xff]
        %v135 = vld [vmem:[%s114 + $0xa0] sm:$0xff]
        %v136 = vld [vmem:[%s114 + $0xa8] sm:$0xff]
        %v137 = vld [vmem:[%s114 + $0xb0] sm:$0xff]
        %v138 = vld [vmem:[%s114 + $0xb8] sm:$0xff]
        %v139 = vld [vmem:[%s114 + $0xc0] sm:$0xff]
        %v140 = vld [vmem:[%s114 + $0xc8] sm:$0xff]
        %v141 = vld [vmem:[%s114 + $0xd0] sm:$0xff]
        %v142 = vld [vmem:[%s114 + $0xd8] sm:$0xff]
        %v143 = vld [vmem:[%s114 + $0xe0] sm:$0xff]
        %v144 = vld [vmem:[%s114 + $0xe8] sm:$0xff]
        %v145 = vld [vmem:[%s114 + $0xf0] sm:$0xff]
        %v146 = vld [vmem:[%s114 + $0xf8] sm:$0xff]
        %vm147 = vcmask 31744
        %v148 = vsel %vm147, %v115, 0.0
        %v149 = vsel %vm147, %v116, 0.0
        %v150 = vadd.f32 %v148, %v149
        %v151 = vsel %vm147, %v117, 0.0
        %v152 = vadd.f32 %v150, %v151
        %v153 = vsel %vm147, %v118, 0.0
        %v154 = vadd.f32 %v152, %v153
        %v155 = vsel %vm147, %v119, 0.0
        %v156 = vadd.f32 %v154, %v155
        %v157 = vsel %vm147, %v120, 0.0
        %v158 = vadd.f32 %v156, %v157
        %v159 = vsel %vm147, %v121, 0.0
        %v160 = vadd.f32 %v158, %v159
        %v161 = vsel %vm147, %v122, 0.0
        %v162 = vadd.f32 %v160, %v161
        %v163 = vsel %vm147, %v123, 0.0
        %v164 = vadd.f32 %v162, %v163
        %v165 = vsel %vm147, %v124, 0.0
        %v166 = vadd.f32 %v164, %v165
        %v167 = vsel %vm147, %v125, 0.0
        %v168 = vadd.f32 %v166, %v167
        %v169 = vsel %vm147, %v126, 0.0
        %v170 = vadd.f32 %v168, %v169
        %v171 = vsel %vm147, %v127, 0.0
        %v172 = vadd.f32 %v170, %v171
        %v173 = vsel %vm147, %v128, 0.0
        %v174 = vadd.f32 %v172, %v173
        %v175 = vsel %vm147, %v129, 0.0
        %v176 = vadd.f32 %v174, %v175
        %v177 = vsel %vm147, %v130, 0.0
        %v178 = vadd.f32 %v176, %v177
        %v179 = vsel %vm147, %v131, 0.0
        %v180 = vadd.f32 %v178, %v179
        %v181 = vsel %vm147, %v132, 0.0
        %v182 = vadd.f32 %v180, %v181
        %v183 = vsel %vm147, %v133, 0.0
        %v184 = vadd.f32 %v182, %v183
        %v185 = vsel %vm147, %v134, 0.0
        %v186 = vadd.f32 %v184, %v185
        %v187 = vsel %vm147, %v135, 0.0
        %v188 = vadd.f32 %v186, %v187
        %v189 = vsel %vm147, %v136, 0.0
        %v190 = vadd.f32 %v188, %v189
        %v191 = vsel %vm147, %v137, 0.0
        %v192 = vadd.f32 %v190, %v191
        %v193 = vsel %vm147, %v138, 0.0
        %v194 = vadd.f32 %v192, %v193
        %v195 = vsel %vm147, %v139, 0.0
        %v196 = vadd.f32 %v194, %v195
        %v197 = vsel %vm147, %v140, 0.0
        %v198 = vadd.f32 %v196, %v197
        %v199 = vsel %vm147, %v141, 0.0
        %v200 = vadd.f32 %v198, %v199
        %v201 = vsel %vm147, %v142, 0.0
        %v202 = vadd.f32 %v200, %v201
        %v203 = vsel %vm147, %v143, 0.0
        %v204 = vadd.f32 %v202, %v203
        %v205 = vsel %vm147, %v144, 0.0
        %v206 = vadd.f32 %v204, %v205
        %v207 = vsel %vm147, %v145, 0.0
        %v208 = vadd.f32 %v206, %v207
        %v209 = vsel %vm147, %v146, 0.0
        %v210 = vadd.f32 %v208, %v209
        %v211 = vrot.slane %v210, 4
        %v212 = vadd.f32 %v210, %v211
        %v213 = vrot.slane %v212, 2
        %v214 = vadd.f32 %v212, %v213
        %v215 = vrot.slane %v214, 1
        %v216 = vadd.f32 %v214, %v215
        %v217 = vmul.f32 %v115, %v115
        %v218 = vmul.f32 %v116, %v116
        %v219 = vmul.f32 %v117, %v117
        %v220 = vmul.f32 %v118, %v118
        %v221 = vmul.f32 %v119, %v119
        %v222 = vmul.f32 %v120, %v120
        %v223 = vmul.f32 %v121, %v121
        %v224 = vmul.f32 %v122, %v122
        %v225 = vmul.f32 %v123, %v123
        %v226 = vmul.f32 %v124, %v124
        %v227 = vmul.f32 %v125, %v125
        %v228 = vmul.f32 %v126, %v126
        %v229 = vmul.f32 %v127, %v127
        %v230 = vmul.f32 %v128, %v128
        %v231 = vmul.f32 %v129, %v129
        %v232 = vmul.f32 %v130, %v130
        %v233 = vmul.f32 %v131, %v131
        %v234 = vmul.f32 %v132, %v132
        %v235 = vmul.f32 %v133, %v133
        %v236 = vmul.f32 %v134, %v134
        %v237 = vmul.f32 %v135, %v135
        %v238 = vmul.f32 %v136, %v136
        %v239 = vmul.f32 %v137, %v137
        %v240 = vmul.f32 %v138, %v138
        %v241 = vmul.f32 %v139, %v139
        %v242 = vmul.f32 %v140, %v140
        %v243 = vmul.f32 %v141, %v141
        %v244 = vmul.f32 %v142, %v142
        %v245 = vmul.f32 %v143, %v143
        %v246 = vmul.f32 %v144, %v144
        %v247 = vmul.f32 %v145, %v145
        %v248 = vmul.f32 %v146, %v146
        %v249 = vsel %vm147, %v217, 0.0
        %v250 = vsel %vm147, %v218, 0.0
        %v251 = vadd.f32 %v249, %v250
        %v252 = vsel %vm147, %v219, 0.0
        %v253 = vadd.f32 %v251, %v252
        %v254 = vsel %vm147, %v220, 0.0
        %v255 = vadd.f32 %v253, %v254
        %v256 = vsel %vm147, %v221, 0.0
        %v257 = vadd.f32 %v255, %v256
        %v258 = vsel %vm147, %v222, 0.0
        %v259 = vadd.f32 %v257, %v258
        %v260 = vsel %vm147, %v223, 0.0
        %v261 = vadd.f32 %v259, %v260
        %v262 = vsel %vm147, %v224, 0.0
        %v263 = vadd.f32 %v261, %v262
        %v264 = vsel %vm147, %v225, 0.0
        %v265 = vadd.f32 %v263, %v264
        %v266 = vsel %vm147, %v226, 0.0
        %v267 = vadd.f32 %v265, %v266
        %v268 = vsel %vm147, %v227, 0.0
        %v269 = vadd.f32 %v267, %v268
        %v270 = vsel %vm147, %v228, 0.0
        %v271 = vadd.f32 %v269, %v270
        %v272 = vsel %vm147, %v229, 0.0
        %v273 = vadd.f32 %v271, %v272
        %v274 = vsel %vm147, %v230, 0.0
        %v275 = vadd.f32 %v273, %v274
        %v276 = vsel %vm147, %v231, 0.0
        %v277 = vadd.f32 %v275, %v276
        %v278 = vsel %vm147, %v232, 0.0
        %v279 = vadd.f32 %v277, %v278
        %v280 = vsel %vm147, %v233, 0.0
        %v281 = vadd.f32 %v279, %v280
        %v282 = vsel %vm147, %v234, 0.0
        %v283 = vadd.f32 %v281, %v282
        %v284 = vsel %vm147, %v235, 0.0
        %v285 = vadd.f32 %v283, %v284
        %v286 = vsel %vm147, %v236, 0.0
        %v287 = vadd.f32 %v285, %v286
        %v288 = vsel %vm147, %v237, 0.0
        %v289 = vadd.f32 %v287, %v288
        %v290 = vsel %vm147, %v238, 0.0
        %v291 = vadd.f32 %v289, %v290
        %v292 = vsel %vm147, %v239, 0.0
        %v293 = vadd.f32 %v291, %v292
        %v294 = vsel %vm147, %v240, 0.0
        %v295 = vadd.f32 %v293, %v294
        %v296 = vsel %vm147, %v241, 0.0
        %v297 = vadd.f32 %v295, %v296
        %v298 = vsel %vm147, %v242, 0.0
        %v299 = vadd.f32 %v297, %v298
        %v300 = vsel %vm147, %v243, 0.0
        %v301 = vadd.f32 %v299, %v300
        %v302 = vsel %vm147, %v244, 0.0
        %v303 = vadd.f32 %v301, %v302
        %v304 = vsel %vm147, %v245, 0.0
        %v305 = vadd.f32 %v303, %v304
        %v306 = vsel %vm147, %v246, 0.0
        %v307 = vadd.f32 %v305, %v306
        %v308 = vsel %vm147, %v247, 0.0
        %v309 = vadd.f32 %v307, %v308
        %v310 = vsel %vm147, %v248, 0.0
        %v311 = vadd.f32 %v309, %v310
        %v312 = vrot.slane %v311, 4
        %v313 = vadd.f32 %v311, %v312
        %v314 = vrot.slane %v313, 2
        %v315 = vadd.f32 %v313, %v314
        %v316 = vrot.slane %v315, 1
        %v317 = vadd.f32 %v315, %v316
        %vm318 = vcmask 1040384
        %v319 = vsel %vm318, %v216, %v317
        %vm320 = vcmask 25600
        %321 = vst.msk [vmem:[%s109] sm:$0x3] %vm320, %v319
        %s322 = sand.u32 %s49, 1
        %s323 = scalar_lea.sflag [#allocation3], %s322
        %s324 = sand.u32 %s49, 1
        %s325 = smul.addr %s324, 2
        %s326 = scalar_lea.vmem [#allocation2], %s325
        // Predicated region
        $region25: #{tpu_custom_call.1} parent=23 // pred_check
          %p327 = pneg %p59
        $region26: #{tpu_custom_call.1} parent=23 // pred_check_branch
          %329 = sbr.rel (%p327) target = $region28
        $region27: #{tpu_custom_call.1} parent=23 // pred_region
          %331 = vsyncadd %s323, 0
          %s332 = smul.addr %s15, 2
          %s333 = scalar_lea.hbm %s1, %s332
          %s335 = sshll.u32 %s326, 4
          %s336 = int_to_ptr.vmem [resolvable:$true] %s335
          %s337 = sshll.u32 %s333, 4
          %s338 = int_to_ptr.hbm [resolvable:$true] %s337
          %340 = dma.vmem_to_hbm [thread:$0]  %s336, 32, %s338, %s323
        $region28: #{tpu_custom_call.1} parent=23 // pred_fallthru
          _
      $region24: #{tpu_custom_call.1} parent=5 // pred_fallthru
        _
      %p341 = scmp.le.s32.totalorder 2, %s10
      // Predicated region
      $region29: #{tpu_custom_call.1} parent=5 // pred_check
        %p342 = pneg %p341
      $region30: #{tpu_custom_call.1} parent=5 // pred_check_branch
        %344 = sbr.rel (%p342) target = $region32
      $region31: #{tpu_custom_call.1} parent=5 // pred_region
        %s345 = ssub.s32 %s10, 2
        // Predicated region
        $region33: #{tpu_custom_call.1} parent=31 // pred_check
          %p346 = pneg %p65
        $region34: #{tpu_custom_call.1} parent=31 // pred_check_branch
          %348 = sbr.rel (%p346) target = $region36
        $region35: #{tpu_custom_call.1} parent=31 // pred_region
          %s349 = sand.u32 %s50, 1
          %s350 = scalar_lea.sflag [#allocation3], %s349
          %s351 = sand.u32 %s50, 1
          %s352 = smul.addr %s351, 2
          %s353 = scalar_lea.vmem [#allocation2], %s352
          %355 = dma.done %s350, 32
        $region36: #{tpu_custom_call.1} parent=31 // pred_fallthru
          _
      $region32: #{tpu_custom_call.1} parent=5 // pred_fallthru
        _
    $region6: #{tpu_custom_call.1} parent=1 // loop_footer
      %s14 = sadd.s32 1, %s10
    $region7: #{tpu_custom_call.1} parent=1 // loop_footer_branch
      %9 = sbr.rel target = $region3
    $region8: #{tpu_custom_call.1} parent=1 // loop_exit
      _
    %356 = vsyncpa [#allocation3], 1
    %s357 = scalar_lea.sflag [#allocation3], 1
    %358 = vsyncpa %s357, 1

</llo_original>
